<compile_context>
chip_gen: v5e
topology: v5e:2x2
jax: 0.10.0
libtpu: 0.0.40
codegen_flags: <defaults>
</compile_context>

<pallas_src>
import functools
import math

import jax
import jax.numpy as jnp
from jax.experimental import pallas as pl
from jax.experimental.pallas import tpu as pltpu


def _round_up(x, m):
    return ((x + m - 1) // m) * m


# ----------------------------------------------------------------------------
# Pallas kernel: shared sensor MLP + attention scores + softmax aggregation
# ----------------------------------------------------------------------------
def _multi_sensor_kernel(r_ref, slab_ref, out_ref, *, num_sensors, h_mid, h_out):
    S = num_sensors
    B = r_ref.shape[0]                     # static batch-tile rows
    base = 8 + 8 * S

    # Merged 128-lane slab layout (all segments 8-sublane aligned, static views):
    #   row 0                          lanes [0:h_mid) : w1 reading-weight row
    #   row 8 + 8*s  (s < S)           lanes [0:h_mid) : per-sensor bias (positions folded)
    #   row base                       lanes [0:h_mid) : ba1
    #   row base+8                     lanes [0:h_mid) : wa2 (as a row)
    #   row base+16                    lanes [0:h_out) : b2
    #   rows [base+24, base+24+h_mid)  lanes [0:h_out) : w2   (32 x 64)
    #   rows [.., ..+h_out)            lanes [0:h_mid) : wa1  (64 x 32)
    w1_row  = slab_ref[0:1, 0:h_mid]                                   # (1, 32)
    ba1     = slab_ref[base:base + 1, 0:h_mid]                         # (1, 32)
    wa2_row = slab_ref[base + 8:base + 9, 0:h_mid]                     # (1, 32)
    b2      = slab_ref[base + 16:base + 17, 0:h_out]                   # (1, 64)
    w2      = slab_ref[base + 24:base + 24 + h_mid, 0:h_out]           # (32, 64)
    wa1     = slab_ref[base + 24 + h_mid:base + 24 + h_mid + h_out, 0:h_mid]  # (64, 32)

    r = r_ref[...]                                                     # (B, S)

    # First layer: rank-1 broadcast-FMA on the VPU per sensor (positions folded
    # into the bias), then stack the sensors along the sublane axis so the
    # remaining matmuls / score reduction run ONCE on (S*B, ...) blocks.
    h1 = jnp.concatenate(
        [jnp.maximum(r[:, s:s + 1] * w1_row
                     + slab_ref[8 + 8 * s:9 + 8 * s, 0:h_mid], 0.0)
         for s in range(S)],
        axis=0)                                                        # (S*B, 32)

    # TODO(synk): for large-batch use on v5e/v6e/v7x, cast h1/h2 (and the w2/wa1
    # slab segments) to bfloat16 before the dots to hit MXU-native throughput.
    h2 = jnp.maximum(
        jnp.dot(h1, w2, preferred_element_type=jnp.float32) + b2, 0.0)   # (S*B, 64)
    a1 = jnp.maximum(
        jnp.dot(h2, wa1, preferred_element_type=jnp.float32) + ba1, 0.0)  # (S*B, 32)
    # N=1 attention score: VPU multiply + cross-lane (XLU) reduction.
    sc = jnp.sum(a1 * wa2_row, axis=-1, keepdims=True)                 # (S*B, 1)

    feats  = [h2[s * B:(s + 1) * B, :] for s in range(S)]              # static sublane slices
    scores = [sc[s * B:(s + 1) * B, :] for s in range(S)]

    if S == 2:
        # softmax over 2 sensors == sigmoid of the score difference (exact).
        w0 = pl.reciprocal(1.0 + jnp.exp(scores[1] - scores[0]), approx=True)  # (B, 1)
        out = feats[1] + w0 * (feats[0] - feats[1])
    else:
        # General path: numerically stable softmax over sensors (static slices only).
        m = scores[0]
        for s in range(1, S):
            m = jnp.maximum(m, scores[s])
        exps = [jnp.exp(sc_s - m) for sc_s in scores]
        denom = exps[0]
        for s in range(1, S):
            denom = denom + exps[s]
        inv = pl.reciprocal(denom, approx=True)
        out = (exps[0] * inv) * feats[0]
        for s in range(1, S):
            out = out + (exps[s] * inv) * feats[s]

    out_ref[...] = out                                                 # (B, 64)


# ----------------------------------------------------------------------------
# One-time parameter packing into a single 128-lane slab
# ----------------------------------------------------------------------------
def pack_params(params, positions, num_sensors):
    w1, b1, w2, b2, wa1, ba1, wa2, ba2 = params
    S = num_sensors
    h_mid, h_out = w2.shape                                            # 32, 64
    h_attn = wa1.shape[1]                                              # 32
    assert h_attn == h_mid, "packing assumes hidden_dims[0] == hidden_dims[1] // 2"
    assert w1.shape[0] == 1 + positions.shape[1], "packing assumes sensor_dim == 1 + 2D positions"

    # Fold constant sensor positions into per-sensor biases.
    pos_bias = positions.astype(jnp.float32) @ w1[1:, :] + b1          # (S, 32)

    base = 8 + 8 * S
    rows = base + 24 + h_mid + h_out
    slab = jnp.zeros((rows, 128), jnp.float32)
    slab = slab.at[0, 0:h_mid].set(w1[0, :])
    for s in range(S):
        slab = slab.at[8 + 8 * s, 0:h_mid].set(pos_bias[s])
    slab = slab.at[base, 0:h_mid].set(ba1[0])
    slab = slab.at[base + 8, 0:h_mid].set(wa2[:, 0])
    slab = slab.at[base + 16, 0:h_out].set(b2[0])
    slab = slab.at[base + 24:base + 24 + h_mid, 0:h_out].set(w2)
    slab = slab.at[base + 24 + h_mid:base + 24 + h_mid + h_out, 0:h_mid].set(wa1)
    # ba2 dropped: it shifts every sensor score equally and cancels in the softmax.
    return slab


# ----------------------------------------------------------------------------
# Wrapper: batch-gridded pallas_call, weight slab resident across grid steps
# ----------------------------------------------------------------------------
def multi_sensor_extractor(sensor_readings, slab, *, num_sensors, h_mid, h_out,
                           batch_tile=512):
    if sensor_readings.ndim == 1:
        sensor_readings = sensor_readings[None, :]
    B = sensor_readings.shape[0]
    S = num_sensors
    r = sensor_readings.astype(jnp.float32)
    if r.shape[1] < S:                       # module pads missing sensors with zeros
        r = jnp.pad(r, ((0, 0), (0, S - r.shape[1])))
    elif r.shape[1] > S:
        r = r[:, :S]

    # Batch tile: >= 8, multiple of 8, capped at 512 (≈85% of HBM roofline in the
    # reference sweeps; per-step footprint well under v7x's scoped VMEM default).
    bt = _round_up(min(batch_tile, _round_up(B, 8)), 8)
    Bp = _round_up(B, bt)
    if Bp != B:
        r = jnp.pad(r, ((0, Bp - B), (0, 0)))

    kernel = functools.partial(_multi_sensor_kernel, num_sensors=S,
                               h_mid=h_mid, h_out=h_out)
    # TODO(synk): if this ever becomes HBM-writeback bound at very large B,
    # present the output lane-dense (last dim multiple of 128) instead of 64.
    out = pl.pallas_call(
        kernel,
        out_shape=jax.ShapeDtypeStruct((Bp, h_out), jnp.float32),
        grid_spec=pltpu.PrefetchScalarGridSpec(
            num_scalar_prefetch=0,
            grid=(Bp // bt,),
            in_specs=[pl.BlockSpec((bt, S), lambda i: (i, 0)),
                      pl.BlockSpec(slab.shape, lambda i: (0, 0))],
            out_specs=pl.BlockSpec((bt, h_out), lambda i: (i, 0)),
        ),
        compiler_params=pltpu.CompilerParams(
            dimension_semantics=("parallel",)),
    )(r, slab)
    return out[:B] if Bp != B else out


# ----------------------------------------------------------------------------
# Deterministic parameter init (xavier_uniform weights, zero biases)
# ----------------------------------------------------------------------------
def _xavier_uniform(key, fan_in, fan_out):
    bound = math.sqrt(6.0 / (fan_in + fan_out))
    return jax.random.uniform(key, (fan_in, fan_out), jnp.float32, -bound, bound)


def init_params(key, input_dim, hidden_dims):
    k1, k2, k3, k4 = jax.random.split(key, 4)
    h0, h1 = hidden_dims
    w1 = _xavier_uniform(k1, input_dim, h0)
    b1 = jnp.zeros((1, h0), jnp.float32)
    w2 = _xavier_uniform(k2, h0, h1)
    b2 = jnp.zeros((1, h1), jnp.float32)
    wa1 = _xavier_uniform(k3, h1, h1 // 2)
    ba1 = jnp.zeros((1, h1 // 2), jnp.float32)
    wa2 = _xavier_uniform(k4, h1 // 2, 1)
    ba2 = jnp.zeros((1, 1), jnp.float32)
    return (w1, b1, w2, b2, wa1, ba1, wa2, ba2)


# ----------------------------------------------------------------------------
# Pure-JAX reference (mirrors the PyTorch forward, eval mode)
# ----------------------------------------------------------------------------
def reference(sensor_readings, params, positions, *, num_sensors):
    w1, b1, w2, b2, wa1, ba1, wa2, ba2 = params
    B = sensor_readings.shape[0]
    feats = []
    for s in range(num_sensors):
        x = jnp.concatenate(
            [sensor_readings[:, s:s + 1],
             jnp.broadcast_to(positions[s:s + 1], (B, 2))], axis=1)
        h = jnp.maximum(x @ w1 + b1, 0.0)
        h = jnp.maximum(h @ w2 + b2, 0.0)
        feats.append(h)
    feats = jnp.stack(feats, axis=1)                            # (B, S, 64)
    a = jnp.maximum(feats @ wa1 + ba1, 0.0)
    sc = a @ wa2 + ba2                                          # (B, S, 1)
    w = jax.nn.softmax(sc, axis=1)
    return jnp.sum(feats * w, axis=1)


if __name__ == "__main__":
    num_sensors = 2          # bilateral layout
    hidden_dims = [32, 64]
    batch = 8
    input_dim = 1 + 2        # sensor_dim + 2D position encoding

    key = jax.random.PRNGKey(0)
    k_param, k_data = jax.random.split(key)

    params = init_params(k_param, input_dim, hidden_dims)
    positions = jnp.array([[-1.0, 0.0], [1.0, 0.0]], dtype=jnp.float32)  # bilateral
    sensor_readings = jax.random.uniform(k_data, (batch, num_sensors), jnp.float32)

    # One-time packing of all parameters into a single 128-lane VMEM slab.
    slab = pack_params(params, positions, num_sensors)

    out = multi_sensor_extractor(sensor_readings, slab,
                                 num_sensors=num_sensors,
                                 h_mid=hidden_dims[0], h_out=hidden_dims[1])
    out = jax.block_until_ready(out)

    ref = reference(sensor_readings, params, positions, num_sensors=num_sensors)
    assert out.shape == (batch, hidden_dims[-1])
    # approx reciprocal (EUP) contributes ~1e-4 relative error on the attention
    # weight; everything else is exact f32.
    assert jnp.allclose(out, ref, rtol=2e-3, atol=2e-3), "mismatch vs reference"

    # Second check: exercise the batch grid (multiple tiles) and row padding.
    r2 = jax.random.uniform(jax.random.PRNGKey(1), (20, num_sensors), jnp.float32)
    out2 = jax.block_until_ready(
        multi_sensor_extractor(r2, slab, num_sensors=num_sensors,
                               h_mid=hidden_dims[0], h_out=hidden_dims[1],
                               batch_tile=8))
    ref2 = reference(r2, params, positions, num_sensors=num_sensors)
    assert out2.shape == (20, hidden_dims[-1])
    assert jnp.allclose(out2, ref2, rtol=2e-3, atol=2e-3), "grid mismatch vs reference"

    print("KERNEL_OK")
</pallas_src>

<mosaic_0001>
module attributes {stable_mosaic.version = 11 : i64} {
  func.func @_multi_sensor_kernel(%arg0: i32, %arg1: memref<8x2xf32, #tpu.memory_space<vmem>>, %arg2: memref<144x128xf32, #tpu.memory_space<vmem>>, %arg3: memref<8x64xf32, #tpu.memory_space<vmem>>) attributes {dimension_semantics = [#tpu.dimension_semantics<parallel>], iteration_bounds = array<i64: 1>, scalar_prefetch = 0 : i64, scratch_operands = 0 : i64, tpu.core_type = #tpu.core_type<tc>, window_params = [{transform_indices = @transform_0, window_bounds = array<i64: 8, 2>}, {pipeline_mode = #tpu.pipeline_mode<synchronous>, transform_indices = @transform_1, window_bounds = array<i64: 144, 128>}, {transform_indices = @transform_2, window_bounds = array<i64: 8, 64>}]} {
    %c0 = arith.constant 0 : index
    %c0_0 = arith.constant 0 : index
    %0 = vector.load %arg2[%c0, %c0_0] : memref<144x128xf32, #tpu.memory_space<vmem>>, vector<1x32xf32>
    %c24 = arith.constant 24 : index
    %c0_1 = arith.constant 0 : index
    %1 = vector.load %arg2[%c24, %c0_1] : memref<144x128xf32, #tpu.memory_space<vmem>>, vector<1x32xf32>
    %c32 = arith.constant 32 : index
    %c0_2 = arith.constant 0 : index
    %2 = vector.load %arg2[%c32, %c0_2] : memref<144x128xf32, #tpu.memory_space<vmem>>, vector<1x32xf32>
    %c40 = arith.constant 40 : index
    %c0_3 = arith.constant 0 : index
    %3 = vector.load %arg2[%c40, %c0_3] : memref<144x128xf32, #tpu.memory_space<vmem>>, vector<1x64xf32>
    %c48 = arith.constant 48 : index
    %c0_4 = arith.constant 0 : index
    %4 = vector.load %arg2[%c48, %c0_4] : memref<144x128xf32, #tpu.memory_space<vmem>>, vector<32x64xf32>
    %c80 = arith.constant 80 : index
    %c0_5 = arith.constant 0 : index
    %5 = vector.load %arg2[%c80, %c0_5] : memref<144x128xf32, #tpu.memory_space<vmem>>, vector<64x32xf32>
    %c0_6 = arith.constant 0 : index
    %c0_7 = arith.constant 0 : index
    %6 = vector.load %arg1[%c0_6, %c0_7] : memref<8x2xf32, #tpu.memory_space<vmem>>, vector<8x2xf32>
    %7 = vector.extract_strided_slice %6 {offsets = [0, 0], sizes = [8, 1], strides = [1, 1]} : vector<8x2xf32> to vector<8x1xf32>
    %8 = vector.broadcast %7 : vector<8x1xf32> to vector<8x32xf32>
    %9 = vector.broadcast %0 : vector<1x32xf32> to vector<8x32xf32>
    %10 = arith.mulf %8, %9 : vector<8x32xf32>
    %c8 = arith.constant 8 : index
    %c0_8 = arith.constant 0 : index
    %11 = vector.load %arg2[%c8, %c0_8] : memref<144x128xf32, #tpu.memory_space<vmem>>, vector<1x32xf32>
    %12 = vector.broadcast %11 : vector<1x32xf32> to vector<8x32xf32>
    %13 = arith.addf %10, %12 : vector<8x32xf32>
    %cst = arith.constant 0.000000e+00 : f32
    %14 = vector.broadcast %cst : f32 to vector<8x32xf32>
    %15 = arith.maximumf %13, %14 : vector<8x32xf32>
    %16 = vector.extract_strided_slice %6 {offsets = [0, 1], sizes = [8, 1], strides = [1, 1]} : vector<8x2xf32> to vector<8x1xf32>
    %17 = vector.broadcast %16 : vector<8x1xf32> to vector<8x32xf32>
    %18 = vector.broadcast %0 : vector<1x32xf32> to vector<8x32xf32>
    %19 = arith.mulf %17, %18 : vector<8x32xf32>
    %c16 = arith.constant 16 : index
    %c0_9 = arith.constant 0 : index
    %20 = vector.load %arg2[%c16, %c0_9] : memref<144x128xf32, #tpu.memory_space<vmem>>, vector<1x32xf32>
    %21 = vector.broadcast %20 : vector<1x32xf32> to vector<8x32xf32>
    %22 = arith.addf %19, %21 : vector<8x32xf32>
    %cst_10 = arith.constant 0.000000e+00 : f32
    %23 = vector.broadcast %cst_10 : f32 to vector<8x32xf32>
    %24 = arith.maximumf %22, %23 : vector<8x32xf32>
    %25 = tpu.concatenate %15, %24 in 0 : vector<8x32xf32>, vector<8x32xf32> -> vector<16x32xf32>
    %cst_11 = arith.constant dense<0.000000e+00> : vector<16x64xf32>
    %26 = tpu.matmul %25, %4, %cst_11 {dimension_numbers = #tpu.dot_dimension_numbers<[1], [0], [0], [1], [0, 0, 1, 1], [], []>} : vector<16x32xf32>, vector<32x64xf32>, vector<16x64xf32> -> vector<16x64xf32>
    %27 = vector.broadcast %3 : vector<1x64xf32> to vector<16x64xf32>
    %28 = arith.addf %26, %27 : vector<16x64xf32>
    %cst_12 = arith.constant 0.000000e+00 : f32
    %29 = vector.broadcast %cst_12 : f32 to vector<16x64xf32>
    %30 = arith.maximumf %28, %29 : vector<16x64xf32>
    %cst_13 = arith.constant dense<0.000000e+00> : vector<16x32xf32>
    %31 = tpu.matmul %30, %5, %cst_13 {dimension_numbers = #tpu.dot_dimension_numbers<[1], [0], [0], [1], [0, 0, 1, 1], [], []>} : vector<16x64xf32>, vector<64x32xf32>, vector<16x32xf32> -> vector<16x32xf32>
    %32 = vector.broadcast %1 : vector<1x32xf32> to vector<16x32xf32>
    %33 = arith.addf %31, %32 : vector<16x32xf32>
    %cst_14 = arith.constant 0.000000e+00 : f32
    %34 = vector.broadcast %cst_14 : f32 to vector<16x32xf32>
    %35 = arith.maximumf %33, %34 : vector<16x32xf32>
    %36 = vector.broadcast %2 : vector<1x32xf32> to vector<16x32xf32>
    %37 = arith.mulf %35, %36 : vector<16x32xf32>
    %cst_15 = arith.constant dense<0.000000e+00> : vector<16xf32>
    %38 = vector.multi_reduction <add>, %37, %cst_15 [1] : vector<16x32xf32> to vector<16xf32>
    %39 = vector.shape_cast %38 : vector<16xf32> to vector<16x1xf32>
    %40 = vector.extract_strided_slice %30 {offsets = [0, 0], sizes = [8, 64], strides = [1, 1]} : vector<16x64xf32> to vector<8x64xf32>
    %41 = vector.extract_strided_slice %30 {offsets = [8, 0], sizes = [8, 64], strides = [1, 1]} : vector<16x64xf32> to vector<8x64xf32>
    %42 = vector.extract_strided_slice %39 {offsets = [0, 0], sizes = [8, 1], strides = [1, 1]} : vector<16x1xf32> to vector<8x1xf32>
    %43 = vector.extract_strided_slice %39 {offsets = [8, 0], sizes = [8, 1], strides = [1, 1]} : vector<16x1xf32> to vector<8x1xf32>
    %44 = arith.subf %43, %42 : vector<8x1xf32>
    %45 = math.exp %44 : vector<8x1xf32>
    %cst_16 = arith.constant 1.000000e+00 : f32
    %46 = vector.broadcast %cst_16 : f32 to vector<8x1xf32>
    %47 = arith.addf %46, %45 : vector<8x1xf32>
    %48 = tpu.reciprocal %47 {approx = true} : vector<8x1xf32> -> vector<8x1xf32>
    %49 = arith.subf %40, %41 : vector<8x64xf32>
    %50 = vector.broadcast %48 : vector<8x1xf32> to vector<8x64xf32>
    %51 = arith.mulf %50, %49 : vector<8x64xf32>
    %52 = arith.addf %41, %51 : vector<8x64xf32>
    %c0_17 = arith.constant 0 : index
    %c0_18 = arith.constant 0 : index
    %53 = vector.load %arg3[%c0_17, %c0_18] : memref<8x64xf32, #tpu.memory_space<vmem>>, vector<8x64xf32>
    tpu.vector_store %arg3[%c0_17, %c0_18], %52 {strides = array<i32>} : memref<8x64xf32, #tpu.memory_space<vmem>>, vector<8x64xf32>,
    return
  }
  func.func @transform_0(%arg0: i32) -> (i32, i32) {
    %c0_i32 = arith.constant 0 : i32
    %c0_i32_0 = arith.constant 0 : i32
    return %arg0, %c0_i32 : i32, i32
  }
  func.func @transform_1(%arg0: i32) -> (i32, i32) {
    %c0_i32 = arith.constant 0 : i32
    %c0_i32_0 = arith.constant 0 : i32
    %c0_i32_1 = arith.constant 0 : i32
    return %c0_i32, %c0_i32_0 : i32, i32
  }
  func.func @transform_2(%arg0: i32) -> (i32, i32) {
    %c0_i32 = arith.constant 0 : i32
    %c0_i32_0 = arith.constant 0 : i32
    return %arg0, %c0_i32 : i32, i32
  }
}

</mosaic_0001>

<llo_original>
// kernel: tpu_custom_call.1
$region0: #{tpu_custom_call.1}
  #allocation0 [shape = 'u32[]', space=smem, size = 0x4, offset = 0x4, fixed_abs, tag = 'smem constant byte address 0x4 - core index']
  #allocation1 [shape = 'u32[72,128]{1,0:T(1,128)}', space=vmem, size = 0x9000, scoped, tag = 'internal scratch']
  %s0 = inlined_call_operand.vmem [shape: f32[8,2], index: 0, kind: input, shape index: {}]
  %s1 = inlined_call_operand.hbm [shape: f32[144,128], index: 1, kind: input, shape index: {}]
  %s2 = inlined_call_operand.hbm [shape: f32[8,64], index: 2, kind: output, shape index: {}]
  %s3 = sld [smem:[#allocation0]]
  $region22: #{tpu_custom_call.1} parent=0
    _
  %s5 = ssub.s32 1, %s3
  %s6 = scalar_select 0, %s5, %s3
  $region1: #{tpu_custom_call.1} parent=0
    #allocation2 [shape = 'u8[73728]{0}', space=vmem, size = 0x12000, scoped, tag = 'input window, operand 1, single buffered']
    #allocation3 [shape = 's32[1]{0}', space=sflag, size = 0x4, scoped, tag = 'scoped memory for tpu_custom_call.1']
    #allocation4 [shape = 's32[1]{0}', space=sflag, size = 0x4, scoped, tag = 'scoped memory for tpu_custom_call.1']
    #allocation5 [shape = 'u8[4096]{0}', space=vmem, size = 0x1000, scoped, tag = 'output window, operand 0, single buffered']
    %7 = vsyncpa [#allocation3], 0
    %8 = vsyncpa [#allocation4], 0
    // Predicated region
    $region2: #{tpu_custom_call.1} parent=1 // pred_check
      _
    $region3: #{tpu_custom_call.1} parent=1 // pred_check_branch
      %10 = sbr.rel (0) target = $region5
    $region4: #{tpu_custom_call.1} parent=1 // pred_region
      _
    $region5: #{tpu_custom_call.1} parent=1 // pred_fallthru
      _
    // Predicated region
    $region6: #{tpu_custom_call.1} parent=1 // pred_check
      _
    $region7: #{tpu_custom_call.1} parent=1 // pred_check_branch
      %12 = sbr.rel (0) target = $region9
    $region8: #{tpu_custom_call.1} parent=1 // pred_region
      %14 = vsyncadd [#allocation3], 0
      %s15 = sshll.u32 %s1, 4
      %s16 = int_to_ptr.hbm [resolvable:$true] %s15
      %s17 = sshll.u32 [#allocation2], 4
      %s18 = int_to_ptr.vmem [resolvable:$true] %s17
      %23 = dma.hbm_to_vmem [thread:$0]  %s16, 2304, %s18, [#allocation3], 128, 128, 8
    $region9: #{tpu_custom_call.1} parent=1 // pred_fallthru
      _
    // Predicated region
    $region10: #{tpu_custom_call.1} parent=1 // pred_check
      _
    $region11: #{tpu_custom_call.1} parent=1 // pred_check_branch
      %25 = sbr.rel (0) target = $region13
    $region12: #{tpu_custom_call.1} parent=1 // pred_region
      %27 = dma.done [#allocation3], 2304
    $region13: #{tpu_custom_call.1} parent=1 // pred_fallthru
      _
    %v28 = vld [vmem:[#allocation2] sm:$0x1]
    %v29 = vld [vmem:[#allocation2 + $0x18] sm:$0x1]
    %v30 = vld [vmem:[#allocation2 + $0x20] sm:$0x1]
    %v31 = vld [vmem:[#allocation2 + $0x28] sm:$0x1]
    %v32 = vld [vmem:[#allocation2 + $0x30] sm:$0xff]
    %v33 = vld [vmem:[#allocation2 + $0x38] sm:$0xff]
    %v34 = vld [vmem:[#allocation2 + $0x40] sm:$0xff]
    %v35 = vld [vmem:[#allocation2 + $0x48] sm:$0xff]
    %v36 = vld [vmem:[#allocation2 + $0x50] sm:$0xff]
    %v37 = vld [vmem:[#allocation2 + $0x58] sm:$0xff]
    %v38 = vld [vmem:[#allocation2 + $0x60] sm:$0xff]
    %v39 = vld [vmem:[#allocation2 + $0x68] sm:$0xff]
    %v40 = vld [vmem:[#allocation2 + $0x70] sm:$0xff]
    %v41 = vld [vmem:[#allocation2 + $0x78] sm:$0xff]
    %v42 = vld [vmem:[#allocation2 + $0x80] sm:$0xff]
    %v43 = vld [vmem:[#allocation2 + $0x88] sm:$0xff]
    %v44 = vld [vmem:[%s0] sm:$0xff]
    %46 = vset.pattern.permute.xlu0 0
    %47 = vperm.xlu0 %46, %v44
    %v48 = vpop.permute.xlu0 %47
    %v50 = vperm.slane %v28, 0
    %v51 = vmul.f32 %v48, %v50
    %v52 = vld [vmem:[#allocation2 + $0x8] sm:$0x1]
    %v53 = vperm.slane %v52, 0
    %v54 = vadd.f32 %v51, %v53
    %v55 = vmax.f32 %v54, 0.0
    %56 = vset.pattern.permute.xlu0 1
    %57 = vperm.xlu0 %56, %v44
    %v58 = vpop.permute.xlu0 %57
    %v60 = vmul.f32 %v58, %v50
    %v61 = vld [vmem:[#allocation2 + $0x10] sm:$0x1]
    %v62 = vperm.slane %v61, 0
    %v63 = vadd.f32 %v60, %v62
    %v64 = vmax.f32 %v63, 0.0
    %v65 = vperm.slane %v31, 0
    %vm66 = vcmask 261120
    %v68 = vsel %vm66, %v55, 0
    %v71 = vsel %vm66, %v64, 0
    %73 = vmatpush.msra.mxu0 0.0
    %74 = vmatpush.msra.mxu0 0.0
    %75 = vmatpush.msra.mxu0 0.0
    %76 = vmatpush.msra.mxu0 0.0
    %77 = vmatpush.msra.mxu0 0.0
    %78 = vmatpush.msra.mxu0 0.0
    %79 = vmatpush.msra.mxu0 0.0
    %80 = vmatpush.msra.mxu0 0.0
    %81 = vmatpush.msra.mxu0 0.0
    %82 = vmatpush.msra.mxu0 0.0
    %83 = vmatpush.msra.mxu0 0.0
    %84 = vmatpush.msra.mxu0 0.0
    %85 = vmatpush.msra.mxu0 %v35
    %86 = vmatpush.msra.mxu0 %v34
    %87 = vmatpush.msra.mxu0 %v33
    %88 = vmatpush.msra.mxu0 %v32
    %89 = vmatmul.f32.gmra.mxu0 %v68
    %v90 = vpop.f32.mrf.mxu0
    %v91 = vadd.f32 %v65, %v90
    %92 = vmatmul.f32.gmra.mxu0 %v71
    %v93 = vpop.f32.mrf.mxu0
    %v94 = vadd.f32 %v65, %v93
    %95 = vdwg.mxu0
    %v96 = vmax.f32 %v91, 0.0
    %v97 = vmax.f32 %v94, 0.0
    %v98 = vperm.slane %v29, 0
    %vm99 = vcmask 523264
    %v101 = vsel %vm99, %v96, 0
    %v104 = vsel %vm99, %v97, 0
    %106 = vmatpush.msra.mxu0 0.0
    %107 = vmatpush.msra.mxu0 0.0
    %108 = vmatpush.msra.mxu0 0.0
    %109 = vmatpush.msra.mxu0 0.0
    %110 = vmatpush.msra.mxu0 0.0
    %111 = vmatpush.msra.mxu0 0.0
    %112 = vmatpush.msra.mxu0 0.0
    %113 = vmatpush.msra.mxu0 0.0
    %114 = vmatpush.msra.mxu0 %v43
    %115 = vmatpush.msra.mxu0 %v42
    %116 = vmatpush.msra.mxu0 %v41
    %117 = vmatpush.msra.mxu0 %v40
    %118 = vmatpush.msra.mxu0 %v39
    %119 = vmatpush.msra.mxu0 %v38
    %120 = vmatpush.msra.mxu0 %v37
    %121 = vmatpush.msra.mxu0 %v36
    %122 = vmatmul.f32.gmra.mxu0 %v101
    %v123 = vpop.f32.mrf.mxu0
    %v124 = vadd.f32 %v98, %v123
    %125 = vmatmul.f32.gmra.mxu0 %v104
    %v126 = vpop.f32.mrf.mxu0
    %v127 = vadd.f32 %v98, %v126
    %128 = vdwg.mxu0
    %v129 = vmax.f32 %v124, 0.0
    %v130 = vmax.f32 %v127, 0.0
    %v131 = vperm.slane %v30, 0
    %v132 = vmul.f32 %v129, %v131
    %v133 = vmul.f32 %v130, %v131
    %v134 = vsel %vm66, %v132, 0.0
    %135 = vadd.xlane.f32.xlu0 %v134
    %v136 = vpop.xlane.xlu0 %135
    %v137 = vsel %vm66, %v133, 0.0
    %138 = vadd.xlane.f32.xlu0 %v137
    %v139 = vpop.xlane.xlu0 %138
    %v140 = vsub.f32 %v139, %v136
    %v141 = vmul.f32 %v140, 1.442695
    %v142 = vpow.pop %v141
    %v143 = vadd.f32 %v142, 1.0
    %v144 = vrcp.pop %v143
    %v145 = vsub.f32 %v96, %v97
    %v146 = vmul.f32 %v144, %v145
    %v147 = vadd.f32 %v97, %v146
    %148 = vst.msk [vmem:[#allocation5] sm:$0xff] %vm99, %v147
    // Predicated region
    $region14: #{tpu_custom_call.1} parent=1 // pred_check
      _
    $region15: #{tpu_custom_call.1} parent=1 // pred_check_branch
      %150 = sbr.rel (0) target = $region17
    $region16: #{tpu_custom_call.1} parent=1 // pred_region
      %152 = vsyncadd [#allocation4], 0
      %s154 = sshll.u32 [#allocation5], 4
      %s155 = int_to_ptr.vmem [resolvable:$true] %s154
      %s156 = sshll.u32 %s2, 4
      %s157 = int_to_ptr.hbm [resolvable:$true] %s156
      %159 = dma.vmem_to_hbm [thread:$0]  %s155, 128, %s157, [#allocation4]
    $region17: #{tpu_custom_call.1} parent=1 // pred_fallthru
      _
    // Predicated region
    $region18: #{tpu_custom_call.1} parent=1 // pred_check
      _
    $region19: #{tpu_custom_call.1} parent=1 // pred_check_branch
      %161 = sbr.rel (0) target = $region21
    $region20: #{tpu_custom_call.1} parent=1 // pred_region
      %163 = dma.done [#allocation4], 128
    $region21: #{tpu_custom_call.1} parent=1 // pred_fallthru
      _
    %164 = vsyncpa [#allocation3], 1
    %165 = vsyncpa [#allocation4], 1

</llo_original>
